<compile_context>
chip_gen: v5e
topology: v5e:2x2
jax: 0.10.0
libtpu: 0.0.40
codegen_flags: <defaults>
</compile_context>

<pallas_src>
import math

import jax
import jax.numpy as jnp
from jax.experimental import pallas as pl
from jax.experimental.pallas import tpu as pltpu

HIDDEN_SZ = 20
N_COORD = 10
TOP_RATIO = 0.5
T = 8

N_TOP = math.ceil(N_COORD * TOP_RATIO)
N_BOTTOM = N_COORD - N_TOP


def _vmem():
    return pl.BlockSpec(memory_space=pltpu.MemorySpace.VMEM)


# ---------------------------------------------------------------------------
# Fused kernel: variance -> descending rank -> permutation one-hots -> norm ->
#               gather (VPU) -> linear_1 (MXU) -> tanh -> time-sum ->
#               linear_2 (VPU/XLU) -> scatter -> rescale
# ---------------------------------------------------------------------------
def _fused_kernel(coord_ref, losses_ref, w1_ref, b1_ref, w2_ref, b2_ref, out_ref):
    n = coord_ref.shape[0]               # number of coordinates
    t = coord_ref.shape[1]               # time steps
    hidden = w1_ref.shape[0]             # hidden size

    coord = coord_ref[...]               # (n, t)
    losses_row = losses_ref[...]         # (1, t)
    w1 = w1_ref[...]                     # (hidden, n+1)
    b1_col = b1_ref[...]                 # (hidden, 1)
    w2 = w2_ref[...]                     # (n, hidden)   natural PyTorch layout
    b2_col = b2_ref[...]                 # (n, 1)

    # w1's natural (unpacked) layout has the losses column at lane n; the two
    # static lane slices below are small in-vreg selects (cheaper than a
    # host-side split that would add XLA glue ops per call).
    w1a = w1[:, :n]                      # (hidden, n)
    w1b = w1[:, n:n + 1]                 # (hidden, 1)

    # ---- column-norm sum from the UN-permuted coord (permutation invariant) ----
    col_norm = jnp.sqrt(jnp.sum(coord * coord, axis=0, keepdims=True))      # (1, t)
    norm_sum = jnp.sum(col_norm, axis=1, keepdims=True)                     # (1, 1)
    inv_norm = pl.reciprocal(norm_sum)                                      # exact 1/x

    # ---- unbiased per-coordinate variance over time ----
    mean = jnp.sum(coord, axis=1, keepdims=True) / t
    dev = coord - mean
    var_col = jnp.sum(dev * dev, axis=1, keepdims=True) / (t - 1)           # (n, 1)

    # ---- descending-variance rank via pairwise compares (stable ties) ----
    ii = jax.lax.broadcasted_iota(jnp.int32, (n, n), 0)                     # sublane idx
    jj = jax.lax.broadcasted_iota(jnp.int32, (n, n), 1)                     # lane idx
    eye_nn = (ii == jj).astype(jnp.float32)

    # exact "transpose" of the tiny (n,1) column: diagonal mask + sublane reduce
    var_row = jnp.sum(eye_nn * var_col, axis=0, keepdims=True)              # (1, n)

    # before[a, b] = 1 iff coordinate a precedes coordinate b in the stable
    # descending sort: var[a] > var[b], or (tie and a < b).
    before = (var_col > var_row) | ((var_col == var_row) & (ii < jj))
    # rank_row[0, b] = number of coordinates preceding b  (sublane reduce -> row form)
    rank_row = jnp.sum(before.astype(jnp.float32), axis=0, keepdims=True)   # (1, n)

    iif = ii.astype(jnp.float32)

    # coord_sampled row holding coordinate i: srow[i] = (rank[i] + n_bottom) mod n
    srow = rank_row + float(N_BOTTOM)
    srow = jnp.where(srow >= n, srow - n, srow)                             # (1, n)
    # gather one-hot: G[k, i] = 1 iff srow[i] == k
    g_mat = (iif == srow).astype(jnp.float32)                               # (n, n)
    # scatter one-hot (row form): S[r, j] = 1 iff rank[j] == r
    s_mat = (iif == rank_row).astype(jnp.float32)                           # (n, n)

    # ---- gather + normalization, entirely on the VPU (no MXU round-trip) ----
    coord_normal = coord * inv_norm                                         # (n, t)
    coord_sampled = g_mat[:, 0:1] * coord_normal[0:1, :]
    for i in range(1, n):                                                   # static loop
        coord_sampled = coord_sampled + g_mat[:, i:i + 1] * coord_normal[i:i + 1, :]

    # ---- linear_1: single small MXU matmul; losses column + bias on the VPU ----
    act = (jnp.dot(w1a, coord_sampled, preferred_element_type=jnp.float32)
           + w1b * losses_row + b1_col)                                     # (hidden, t)
    hsum_col = jnp.sum(jnp.tanh(act), axis=1, keepdims=True)                # (hidden, 1)

    # transpose (hidden,1) -> (1,hidden) via diagonal mask + sublane reduce
    hi = jax.lax.broadcasted_iota(jnp.int32, (hidden, hidden), 0)
    hj = jax.lax.broadcasted_iota(jnp.int32, (hidden, hidden), 1)
    eye_hh = (hi == hj).astype(jnp.float32)
    hsum_row = jnp.sum(eye_hh * hsum_col, axis=0, keepdims=True)            # (1, hidden)

    # ---- linear_2 on VPU/XLU: us_col[r] = sum_h w2[r,h] * hsum[h] + b2[r] ----
    us_col = jnp.sum(w2 * hsum_row, axis=1, keepdims=True) + b2_col         # (n, 1) rank order

    # ---- scatter (rank -> coordinate) in ROW form: lane-dense (1, n) output ----
    out_ref[...] = jnp.sum(s_mat * us_col, axis=0, keepdims=True) * norm_sum   # (1, n)


def _cost_estimate(n, t, hidden):
    flops = (2 * n * n * t          # VPU one-hot gather
             + 2 * hidden * n * t   # linear_1 matmul
             + 2 * n * hidden       # linear_2 reduce
             + 6 * n * t + 6 * n * n)  # variance / rank / transpose / scatter
    transcendentals = hidden * t + t + 1      # tanh + sqrt + reciprocal
    bytes_accessed = 4 * (n * t + t + hidden * (n + 1) + hidden + n * hidden + n + n)
    return pl.CostEstimate(flops=flops, transcendentals=transcendentals,
                           bytes_accessed=bytes_accessed)


def predictor_forward(coord_rel, losses, params):
    w1, b1, w2, b2 = params
    n, t = coord_rel.shape
    assert n == N_COORD
    hidden = w1.shape[0]

    out_row = pl.pallas_call(
        _fused_kernel,
        out_shape=jax.ShapeDtypeStruct((1, n), jnp.float32),   # lane-dense row
        in_specs=[_vmem()] * 6,
        out_specs=_vmem(),
        cost_estimate=_cost_estimate(n, t, hidden),
    )(
        coord_rel.astype(jnp.float32),                  # (n, t)
        losses.reshape(1, -1).astype(jnp.float32),      # (1, t)   metadata-only reshape
        w1.astype(jnp.float32),                         # (hidden, n+1)
        b1.reshape(-1, 1).astype(jnp.float32),          # (hidden, 1)
        w2.astype(jnp.float32),                         # (n, hidden)
        b2.reshape(-1, 1).astype(jnp.float32),          # (n, 1)
    )
    # layout plumbing only: (1, n) -> (n, 1) is a contiguous reshape, not a transpose
    return out_row.reshape(n, 1)


# ---------------------------------------------------------------------------
# Pure-JAX reference (mirrors the PyTorch forward) for the correctness check.
# ---------------------------------------------------------------------------
def ref_forward(coord_rel, losses, w1, b1, w2, b2):
    n_coord = coord_rel.shape[0]
    coord_var = jnp.var(coord_rel, axis=1, ddof=1)
    update_id = jnp.argsort(-coord_var)
    coord_top = coord_rel[update_id[N_TOP:]]
    coord_bottom = coord_rel[update_id[:n_coord - N_BOTTOM]]
    coord_sampled = jnp.concatenate([coord_top, coord_bottom], 0)
    coord_norm_sum = jnp.sqrt((coord_sampled ** 2).sum(0)).sum()
    coord_normal = coord_sampled / coord_norm_sum
    inp = jnp.concatenate([coord_normal, losses.reshape(1, -1)], 0).T
    h = jnp.tanh(inp @ w1.T + b1)
    us = h.sum(0) @ w2.T + b2
    upd = jnp.zeros((n_coord, 1), jnp.float32).at[update_id].add(us[:, None])
    return upd * coord_norm_sum


if __name__ == "__main__":
    key = jax.random.PRNGKey(0)
    k1, k2, k3, k4, k5, k6 = jax.random.split(key, 6)

    coord_rel = jax.random.normal(k1, (N_COORD, T), jnp.float32)
    losses = jax.random.normal(k2, (T,), jnp.float32)

    # deterministic Linear params (PyTorch-style uniform bounds)
    bound1 = 1.0 / math.sqrt(N_COORD + 1)
    w1 = jax.random.uniform(k3, (HIDDEN_SZ, N_COORD + 1), jnp.float32, -bound1, bound1)
    b1 = jax.random.uniform(k4, (HIDDEN_SZ,), jnp.float32, -bound1, bound1)
    bound2 = 1.0 / math.sqrt(HIDDEN_SZ)
    w2 = jax.random.uniform(k5, (N_COORD, HIDDEN_SZ), jnp.float32, -bound2, bound2)
    b2 = jax.random.uniform(k6, (N_COORD,), jnp.float32, -bound2, bound2)
    params = (w1, b1, w2, b2)

    out = jax.jit(predictor_forward)(coord_rel, losses, params)
    out = jax.block_until_ready(out)

    ref = ref_forward(coord_rel, losses, w1, b1, w2, b2)
    assert out.shape == (N_COORD, 1)
    assert jnp.allclose(out, ref, atol=1e-4, rtol=1e-4), (out, ref)
    print("KERNEL_OK")
</pallas_src>

<mosaic_0001>
module attributes {stable_mosaic.version = 11 : i64} {
  func.func @_fused_kernel(%arg0: memref<10x8xf32, #tpu.memory_space<vmem>>, %arg1: memref<1x8xf32, #tpu.memory_space<vmem>>, %arg2: memref<20x11xf32, #tpu.memory_space<vmem>>, %arg3: memref<20x1xf32, #tpu.memory_space<vmem>>, %arg4: memref<10x20xf32, #tpu.memory_space<vmem>>, %arg5: memref<10x1xf32, #tpu.memory_space<vmem>>, %arg6: memref<1x10xf32, #tpu.memory_space<vmem>>) attributes {dimension_semantics = [], scalar_prefetch = 0 : i64, scratch_operands = 0 : i64, tpu.core_type = #tpu.core_type<tc>} {
    %c0 = arith.constant 0 : index
    %c0_0 = arith.constant 0 : index
    %0 = vector.load %arg0[%c0, %c0_0] : memref<10x8xf32, #tpu.memory_space<vmem>>, vector<10x8xf32>
    %c0_1 = arith.constant 0 : index
    %c0_2 = arith.constant 0 : index
    %1 = vector.load %arg1[%c0_1, %c0_2] : memref<1x8xf32, #tpu.memory_space<vmem>>, vector<1x8xf32>
    %c0_3 = arith.constant 0 : index
    %c0_4 = arith.constant 0 : index
    %2 = vector.load %arg2[%c0_3, %c0_4] : memref<20x11xf32, #tpu.memory_space<vmem>>, vector<20x11xf32>
    %c0_5 = arith.constant 0 : index
    %c0_6 = arith.constant 0 : index
    %3 = vector.load %arg3[%c0_5, %c0_6] : memref<20x1xf32, #tpu.memory_space<vmem>>, vector<20x1xf32>
    %c0_7 = arith.constant 0 : index
    %c0_8 = arith.constant 0 : index
    %4 = vector.load %arg4[%c0_7, %c0_8] : memref<10x20xf32, #tpu.memory_space<vmem>>, vector<10x20xf32>
    %c0_9 = arith.constant 0 : index
    %c0_10 = arith.constant 0 : index
    %5 = vector.load %arg5[%c0_9, %c0_10] : memref<10x1xf32, #tpu.memory_space<vmem>>, vector<10x1xf32>
    %6 = vector.extract_strided_slice %2 {offsets = [0, 0], sizes = [20, 10], strides = [1, 1]} : vector<20x11xf32> to vector<20x10xf32>
    %7 = vector.extract_strided_slice %2 {offsets = [0, 10], sizes = [20, 1], strides = [1, 1]} : vector<20x11xf32> to vector<20x1xf32>
    %8 = arith.mulf %0, %0 : vector<10x8xf32>
    %cst = arith.constant dense<0.000000e+00> : vector<8xf32>
    %9 = vector.multi_reduction <add>, %8, %cst [0] : vector<10x8xf32> to vector<8xf32>
    %10 = vector.shape_cast %9 : vector<8xf32> to vector<1x8xf32>
    %11 = math.sqrt %10 : vector<1x8xf32>
    %cst_11 = arith.constant dense<0.000000e+00> : vector<1xf32>
    %12 = vector.multi_reduction <add>, %11, %cst_11 [1] : vector<1x8xf32> to vector<1xf32>
    %13 = vector.shape_cast %12 : vector<1xf32> to vector<1x1xf32>
    %14 = tpu.reciprocal %13 : vector<1x1xf32> -> vector<1x1xf32>
    %cst_12 = arith.constant dense<0.000000e+00> : vector<10xf32>
    %15 = vector.multi_reduction <add>, %0, %cst_12 [1] : vector<10x8xf32> to vector<10xf32>
    %16 = vector.shape_cast %15 : vector<10xf32> to vector<10x1xf32>
    %cst_13 = arith.constant 8.000000e+00 : f32
    %17 = vector.broadcast %cst_13 : f32 to vector<10x1xf32>
    %18 = arith.divf %16, %17 : vector<10x1xf32>
    %19 = vector.broadcast %18 : vector<10x1xf32> to vector<10x8xf32>
    %20 = arith.subf %0, %19 : vector<10x8xf32>
    %21 = arith.mulf %20, %20 : vector<10x8xf32>
    %cst_14 = arith.constant dense<0.000000e+00> : vector<10xf32>
    %22 = vector.multi_reduction <add>, %21, %cst_14 [1] : vector<10x8xf32> to vector<10xf32>
    %23 = vector.shape_cast %22 : vector<10xf32> to vector<10x1xf32>
    %cst_15 = arith.constant 7.000000e+00 : f32
    %24 = vector.broadcast %cst_15 : f32 to vector<10x1xf32>
    %25 = arith.divf %23, %24 : vector<10x1xf32>
    %26 = tpu.iota {dimensions = array<i32: 0>} : vector<10x10xi32>
    %27 = tpu.iota {dimensions = array<i32: 1>} : vector<10x10xi32>
    %28 = arith.cmpi eq, %26, %27 : vector<10x10xi32>
    %29 = arith.extui %28 : vector<10x10xi1> to vector<10x10xi32>
    %30 = arith.sitofp %29 : vector<10x10xi32> to vector<10x10xf32>
    %31 = vector.broadcast %25 : vector<10x1xf32> to vector<10x10xf32>
    %32 = arith.mulf %30, %31 : vector<10x10xf32>
    %cst_16 = arith.constant dense<0.000000e+00> : vector<10xf32>
    %33 = vector.multi_reduction <add>, %32, %cst_16 [0] : vector<10x10xf32> to vector<10xf32>
    %34 = vector.shape_cast %33 : vector<10xf32> to vector<1x10xf32>
    %35 = vector.broadcast %25 : vector<10x1xf32> to vector<10x10xf32>
    %36 = vector.broadcast %34 : vector<1x10xf32> to vector<10x10xf32>
    %37 = arith.cmpf ogt, %35, %36 : vector<10x10xf32>
    %38 = vector.broadcast %25 : vector<10x1xf32> to vector<10x10xf32>
    %39 = vector.broadcast %34 : vector<1x10xf32> to vector<10x10xf32>
    %40 = arith.cmpf oeq, %38, %39 : vector<10x10xf32>
    %41 = arith.cmpi slt, %26, %27 : vector<10x10xi32>
    %42 = arith.andi %40, %41 : vector<10x10xi1>
    %43 = arith.ori %37, %42 : vector<10x10xi1>
    %44 = arith.extui %43 : vector<10x10xi1> to vector<10x10xi32>
    %45 = arith.sitofp %44 : vector<10x10xi32> to vector<10x10xf32>
    %cst_17 = arith.constant dense<0.000000e+00> : vector<10xf32>
    %46 = vector.multi_reduction <add>, %45, %cst_17 [0] : vector<10x10xf32> to vector<10xf32>
    %47 = vector.shape_cast %46 : vector<10xf32> to vector<1x10xf32>
    %48 = arith.sitofp %26 : vector<10x10xi32> to vector<10x10xf32>
    %cst_18 = arith.constant 5.000000e+00 : f32
    %49 = vector.broadcast %cst_18 : f32 to vector<1x10xf32>
    %50 = arith.addf %47, %49 : vector<1x10xf32>
    %cst_19 = arith.constant 1.000000e+01 : f32
    %51 = vector.broadcast %cst_19 : f32 to vector<1x10xf32>
    %52 = arith.cmpf oge, %50, %51 : vector<1x10xf32>
    %cst_20 = arith.constant 1.000000e+01 : f32
    %53 = vector.broadcast %cst_20 : f32 to vector<1x10xf32>
    %54 = arith.subf %50, %53 : vector<1x10xf32>
    %55 = arith.select %52, %54, %50 : vector<1x10xi1>, vector<1x10xf32>
    %56 = vector.broadcast %55 : vector<1x10xf32> to vector<10x10xf32>
    %57 = arith.cmpf oeq, %48, %56 : vector<10x10xf32>
    %58 = arith.extui %57 : vector<10x10xi1> to vector<10x10xi32>
    %59 = arith.sitofp %58 : vector<10x10xi32> to vector<10x10xf32>
    %60 = vector.broadcast %47 : vector<1x10xf32> to vector<10x10xf32>
    %61 = arith.cmpf oeq, %48, %60 : vector<10x10xf32>
    %62 = arith.extui %61 : vector<10x10xi1> to vector<10x10xi32>
    %63 = arith.sitofp %62 : vector<10x10xi32> to vector<10x10xf32>
    %64 = vector.broadcast %14 : vector<1x1xf32> to vector<10x8xf32>
    %65 = arith.mulf %0, %64 : vector<10x8xf32>
    %66 = vector.extract_strided_slice %59 {offsets = [0, 0], sizes = [10, 1], strides = [1, 1]} : vector<10x10xf32> to vector<10x1xf32>
    %67 = vector.extract_strided_slice %65 {offsets = [0, 0], sizes = [1, 8], strides = [1, 1]} : vector<10x8xf32> to vector<1x8xf32>
    %68 = vector.broadcast %66 : vector<10x1xf32> to vector<10x8xf32>
    %69 = vector.broadcast %67 : vector<1x8xf32> to vector<10x8xf32>
    %70 = arith.mulf %68, %69 : vector<10x8xf32>
    %71 = vector.extract_strided_slice %59 {offsets = [0, 1], sizes = [10, 1], strides = [1, 1]} : vector<10x10xf32> to vector<10x1xf32>
    %72 = vector.extract_strided_slice %65 {offsets = [1, 0], sizes = [1, 8], strides = [1, 1]} : vector<10x8xf32> to vector<1x8xf32>
    %73 = vector.broadcast %71 : vector<10x1xf32> to vector<10x8xf32>
    %74 = vector.broadcast %72 : vector<1x8xf32> to vector<10x8xf32>
    %75 = arith.mulf %73, %74 : vector<10x8xf32>
    %76 = arith.addf %70, %75 : vector<10x8xf32>
    %77 = vector.extract_strided_slice %59 {offsets = [0, 2], sizes = [10, 1], strides = [1, 1]} : vector<10x10xf32> to vector<10x1xf32>
    %78 = vector.extract_strided_slice %65 {offsets = [2, 0], sizes = [1, 8], strides = [1, 1]} : vector<10x8xf32> to vector<1x8xf32>
    %79 = vector.broadcast %77 : vector<10x1xf32> to vector<10x8xf32>
    %80 = vector.broadcast %78 : vector<1x8xf32> to vector<10x8xf32>
    %81 = arith.mulf %79, %80 : vector<10x8xf32>
    %82 = arith.addf %76, %81 : vector<10x8xf32>
    %83 = vector.extract_strided_slice %59 {offsets = [0, 3], sizes = [10, 1], strides = [1, 1]} : vector<10x10xf32> to vector<10x1xf32>
    %84 = vector.extract_strided_slice %65 {offsets = [3, 0], sizes = [1, 8], strides = [1, 1]} : vector<10x8xf32> to vector<1x8xf32>
    %85 = vector.broadcast %83 : vector<10x1xf32> to vector<10x8xf32>
    %86 = vector.broadcast %84 : vector<1x8xf32> to vector<10x8xf32>
    %87 = arith.mulf %85, %86 : vector<10x8xf32>
    %88 = arith.addf %82, %87 : vector<10x8xf32>
    %89 = vector.extract_strided_slice %59 {offsets = [0, 4], sizes = [10, 1], strides = [1, 1]} : vector<10x10xf32> to vector<10x1xf32>
    %90 = vector.extract_strided_slice %65 {offsets = [4, 0], sizes = [1, 8], strides = [1, 1]} : vector<10x8xf32> to vector<1x8xf32>
    %91 = vector.broadcast %89 : vector<10x1xf32> to vector<10x8xf32>
    %92 = vector.broadcast %90 : vector<1x8xf32> to vector<10x8xf32>
    %93 = arith.mulf %91, %92 : vector<10x8xf32>
    %94 = arith.addf %88, %93 : vector<10x8xf32>
    %95 = vector.extract_strided_slice %59 {offsets = [0, 5], sizes = [10, 1], strides = [1, 1]} : vector<10x10xf32> to vector<10x1xf32>
    %96 = vector.extract_strided_slice %65 {offsets = [5, 0], sizes = [1, 8], strides = [1, 1]} : vector<10x8xf32> to vector<1x8xf32>
    %97 = vector.broadcast %95 : vector<10x1xf32> to vector<10x8xf32>
    %98 = vector.broadcast %96 : vector<1x8xf32> to vector<10x8xf32>
    %99 = arith.mulf %97, %98 : vector<10x8xf32>
    %100 = arith.addf %94, %99 : vector<10x8xf32>
    %101 = vector.extract_strided_slice %59 {offsets = [0, 6], sizes = [10, 1], strides = [1, 1]} : vector<10x10xf32> to vector<10x1xf32>
    %102 = vector.extract_strided_slice %65 {offsets = [6, 0], sizes = [1, 8], strides = [1, 1]} : vector<10x8xf32> to vector<1x8xf32>
    %103 = vector.broadcast %101 : vector<10x1xf32> to vector<10x8xf32>
    %104 = vector.broadcast %102 : vector<1x8xf32> to vector<10x8xf32>
    %105 = arith.mulf %103, %104 : vector<10x8xf32>
    %106 = arith.addf %100, %105 : vector<10x8xf32>
    %107 = vector.extract_strided_slice %59 {offsets = [0, 7], sizes = [10, 1], strides = [1, 1]} : vector<10x10xf32> to vector<10x1xf32>
    %108 = vector.extract_strided_slice %65 {offsets = [7, 0], sizes = [1, 8], strides = [1, 1]} : vector<10x8xf32> to vector<1x8xf32>
    %109 = vector.broadcast %107 : vector<10x1xf32> to vector<10x8xf32>
    %110 = vector.broadcast %108 : vector<1x8xf32> to vector<10x8xf32>
    %111 = arith.mulf %109, %110 : vector<10x8xf32>
    %112 = arith.addf %106, %111 : vector<10x8xf32>
    %113 = vector.extract_strided_slice %59 {offsets = [0, 8], sizes = [10, 1], strides = [1, 1]} : vector<10x10xf32> to vector<10x1xf32>
    %114 = vector.extract_strided_slice %65 {offsets = [8, 0], sizes = [1, 8], strides = [1, 1]} : vector<10x8xf32> to vector<1x8xf32>
    %115 = vector.broadcast %113 : vector<10x1xf32> to vector<10x8xf32>
    %116 = vector.broadcast %114 : vector<1x8xf32> to vector<10x8xf32>
    %117 = arith.mulf %115, %116 : vector<10x8xf32>
    %118 = arith.addf %112, %117 : vector<10x8xf32>
    %119 = vector.extract_strided_slice %59 {offsets = [0, 9], sizes = [10, 1], strides = [1, 1]} : vector<10x10xf32> to vector<10x1xf32>
    %120 = vector.extract_strided_slice %65 {offsets = [9, 0], sizes = [1, 8], strides = [1, 1]} : vector<10x8xf32> to vector<1x8xf32>
    %121 = vector.broadcast %119 : vector<10x1xf32> to vector<10x8xf32>
    %122 = vector.broadcast %120 : vector<1x8xf32> to vector<10x8xf32>
    %123 = arith.mulf %121, %122 : vector<10x8xf32>
    %124 = arith.addf %118, %123 : vector<10x8xf32>
    %cst_21 = arith.constant dense<0.000000e+00> : vector<20x8xf32>
    %125 = tpu.matmul %6, %124, %cst_21 {dimension_numbers = #tpu.dot_dimension_numbers<[1], [0], [0], [1], [0, 0, 1, 1], [], []>} : vector<20x10xf32>, vector<10x8xf32>, vector<20x8xf32> -> vector<20x8xf32>
    %126 = vector.broadcast %7 : vector<20x1xf32> to vector<20x8xf32>
    %127 = vector.broadcast %1 : vector<1x8xf32> to vector<20x8xf32>
    %128 = arith.mulf %126, %127 : vector<20x8xf32>
    %129 = arith.addf %125, %128 : vector<20x8xf32>
    %130 = vector.broadcast %3 : vector<20x1xf32> to vector<20x8xf32>
    %131 = arith.addf %129, %130 : vector<20x8xf32>
    %132 = math.tanh %131 : vector<20x8xf32>
    %cst_22 = arith.constant dense<0.000000e+00> : vector<20xf32>
    %133 = vector.multi_reduction <add>, %132, %cst_22 [1] : vector<20x8xf32> to vector<20xf32>
    %134 = vector.shape_cast %133 : vector<20xf32> to vector<20x1xf32>
    %135 = tpu.iota {dimensions = array<i32: 0>} : vector<20x20xi32>
    %136 = tpu.iota {dimensions = array<i32: 1>} : vector<20x20xi32>
    %137 = arith.cmpi eq, %135, %136 : vector<20x20xi32>
    %138 = arith.extui %137 : vector<20x20xi1> to vector<20x20xi32>
    %139 = arith.sitofp %138 : vector<20x20xi32> to vector<20x20xf32>
    %140 = vector.broadcast %134 : vector<20x1xf32> to vector<20x20xf32>
    %141 = arith.mulf %139, %140 : vector<20x20xf32>
    %cst_23 = arith.constant dense<0.000000e+00> : vector<20xf32>
    %142 = vector.multi_reduction <add>, %141, %cst_23 [0] : vector<20x20xf32> to vector<20xf32>
    %143 = vector.shape_cast %142 : vector<20xf32> to vector<1x20xf32>
    %144 = vector.broadcast %143 : vector<1x20xf32> to vector<10x20xf32>
    %145 = arith.mulf %4, %144 : vector<10x20xf32>
    %cst_24 = arith.constant dense<0.000000e+00> : vector<10xf32>
    %146 = vector.multi_reduction <add>, %145, %cst_24 [1] : vector<10x20xf32> to vector<10xf32>
    %147 = vector.shape_cast %146 : vector<10xf32> to vector<10x1xf32>
    %148 = arith.addf %147, %5 : vector<10x1xf32>
    %149 = vector.broadcast %148 : vector<10x1xf32> to vector<10x10xf32>
    %150 = arith.mulf %63, %149 : vector<10x10xf32>
    %cst_25 = arith.constant dense<0.000000e+00> : vector<10xf32>
    %151 = vector.multi_reduction <add>, %150, %cst_25 [0] : vector<10x10xf32> to vector<10xf32>
    %152 = vector.shape_cast %151 : vector<10xf32> to vector<1x10xf32>
    %153 = vector.broadcast %13 : vector<1x1xf32> to vector<1x10xf32>
    %154 = arith.mulf %152, %153 : vector<1x10xf32>
    %c0_26 = arith.constant 0 : index
    %c0_27 = arith.constant 0 : index
    %155 = vector.load %arg6[%c0_26, %c0_27] : memref<1x10xf32, #tpu.memory_space<vmem>>, vector<1x10xf32>
    tpu.vector_store %arg6[%c0_26, %c0_27], %154 {strides = array<i32>} : memref<1x10xf32, #tpu.memory_space<vmem>>, vector<1x10xf32>,
    return
  }
}

</mosaic_0001>

<llo_original>
// kernel: predictor_forward.1
$region0: #{predictor_forward.1}
  #allocation0 [shape = 'u32[]', space=smem, size = 0x4, offset = 0x4, fixed_abs, tag = 'smem constant byte address 0x4 - core index']
  #allocation1 [shape = 'u32[72,128]{1,0:T(1,128)}', space=vmem, size = 0x9000, scoped, tag = 'internal scratch']
  %s0 = inlined_call_operand.vmem [shape: f32[10,8], index: 0, kind: input, shape index: {}]
  %s1 = inlined_call_operand.vmem [shape: f32[1,8], index: 1, kind: input, shape index: {}]
  %s2 = inlined_call_operand.vmem [shape: f32[20,11], index: 2, kind: input, shape index: {}]
  %s3 = inlined_call_operand.vmem [shape: f32[20,1], index: 3, kind: input, shape index: {}]
  %s4 = inlined_call_operand.vmem [shape: f32[10,20], index: 4, kind: input, shape index: {}]
  %s5 = inlined_call_operand.vmem [shape: f32[10,1], index: 5, kind: input, shape index: {}]
  %s6 = inlined_call_operand.hbm [shape: f32[1,10], index: 6, kind: output, shape index: {}]
  %s7 = sld [smem:[#allocation0]]
  $region34: #{predictor_forward.1} parent=0
    _
  %s9 = ssub.s32 1, %s7
  %s10 = scalar_select 0, %s9, %s7
  $region1: #{predictor_forward.1} parent=0
    #allocation2 [shape = 'u8[512]{0}', space=vmem, size = 0x400, scoped, tag = 'output window, operand 0, single buffered']
    #allocation3 [shape = 's32[1]{0}', space=sflag, size = 0x4, scoped, tag = 'scoped memory for predictor_forward.1']
    %11 = vsyncpa [#allocation3], 0
    // Predicated region
    $region2: #{predictor_forward.1} parent=1 // pred_check
      _
    $region3: #{predictor_forward.1} parent=1 // pred_check_branch
      %13 = sbr.rel (0) target = $region5
    $region4: #{predictor_forward.1} parent=1 // pred_region
      _
    $region5: #{predictor_forward.1} parent=1 // pred_fallthru
      _
    // Predicated region
    $region6: #{predictor_forward.1} parent=1 // pred_check
      _
    $region7: #{predictor_forward.1} parent=1 // pred_check_branch
      %15 = sbr.rel (0) target = $region9
    $region8: #{predictor_forward.1} parent=1 // pred_region
      _
    $region9: #{predictor_forward.1} parent=1 // pred_fallthru
      _
    // Predicated region
    $region10: #{predictor_forward.1} parent=1 // pred_check
      _
    $region11: #{predictor_forward.1} parent=1 // pred_check_branch
      %17 = sbr.rel (0) target = $region13
    $region12: #{predictor_forward.1} parent=1 // pred_region
      _
    $region13: #{predictor_forward.1} parent=1 // pred_fallthru
      _
    // Predicated region
    $region14: #{predictor_forward.1} parent=1 // pred_check
      _
    $region15: #{predictor_forward.1} parent=1 // pred_check_branch
      %19 = sbr.rel (0) target = $region17
    $region16: #{predictor_forward.1} parent=1 // pred_region
      _
    $region17: #{predictor_forward.1} parent=1 // pred_fallthru
      _
    // Predicated region
    $region18: #{predictor_forward.1} parent=1 // pred_check
      _
    $region19: #{predictor_forward.1} parent=1 // pred_check_branch
      %21 = sbr.rel (0) target = $region21
    $region20: #{predictor_forward.1} parent=1 // pred_region
      _
    $region21: #{predictor_forward.1} parent=1 // pred_fallthru
      _
    // Predicated region
    $region22: #{predictor_forward.1} parent=1 // pred_check
      _
    $region23: #{predictor_forward.1} parent=1 // pred_check_branch
      %23 = sbr.rel (0) target = $region25
    $region24: #{predictor_forward.1} parent=1 // pred_region
      _
    $region25: #{predictor_forward.1} parent=1 // pred_fallthru
      _
    %v24 = vld [vmem:[%s0] sm:$0xff]
    %v25 = vld [vmem:[%s0 + $0x8] sm:$0x3]
    %v26 = vld [vmem:[%s1] sm:$0x1]
    %v27 = vld [vmem:[%s2] sm:$0xff]
    %v28 = vld [vmem:[%s2 + $0x8] sm:$0xff]
    %v29 = vld [vmem:[%s2 + $0x10] sm:$0xf]
    %v30 = vld [vmem:[%s3] sm:$0xff]
    %v31 = vld [vmem:[%s3 + $0x8] sm:$0xff]
    %v32 = vld [vmem:[%s3 + $0x10] sm:$0xf]
    %v33 = vld [vmem:[%s4] sm:$0xff]
    %v34 = vld [vmem:[%s4 + $0x8] sm:$0x3]
    %v35 = vld [vmem:[%s5] sm:$0xff]
    %v36 = vld [vmem:[%s5 + $0x8] sm:$0x3]
    %v37 = vmul.f32 %v24, %v24
    %v38 = vmul.f32 %v25, %v25
    %vm39 = vcmask 64512
    %v40 = vsel %vm39, %v37, 0.0
    %vm41 = vcmask 58368
    %v42 = vsel %vm41, %v38, 0.0
    %v43 = vadd.f32 %v40, %v42
    %v44 = vrot.slane %v43, 4
    %v45 = vadd.f32 %v43, %v44
    %v46 = vrot.slane %v45, 2
    %v47 = vadd.f32 %v45, %v46
    %v48 = vrot.slane %v47, 1
    %v49 = vadd.f32 %v47, %v48
    %v50 = vrsqrt.pop %v49
    %v51 = vmul.f32 %v50, %v49
    %v52 = vmul.f32 %v51, %v50
    %v53 = vmul.f32 0.5, %v52
    %v54 = vsub.f32 1.5, %v53
    %v55 = vmul.f32 %v50, %v54
    %v56 = vmul.f32 %v49, %v55
    %vm57 = vcmp.eq.f32.partialorder %v49, inf
    %v58 = vsel %vm57, %v49, %v56
    %vm59 = vcmp.eq.f32.partialorder %v49, 0.0
    %v60 = vand.u32 %v49, 2147483648
    %v61 = vsel %vm59, %v60, %v58
    %v62 = vsel %vm39, %v61, 0.0
    %63 = vadd.xlane.f32.xlu0 %v62
    %v64 = vpop.xlane.xlu0 %63
    %v65 = vrcp.pop %v64
    %v66 = vmul.f32 %v64, %v65
    %v67 = vsub.f32 1.0, %v66
    %v68 = vmul.f32 %v65, %v67
    %v69 = vadd.f32 %v65, %v68
    %vm70 = vweird.f32 %v64
    %vm71 = vweird.f32 %v65
    %vm72 = vmor %vm70, %vm71
    %v73 = vsel %vm72, %v65, %v69
    %v74 = vand.u32 2147483647, %v64
    %vm75 = vcmp.eq.f32.partialorder %v74, 8.507059e+37
    %v76 = vand.u32 %v64, 2147483648
    %v77 = vor.u32 1.1754944e-38, %v76
    %v78 = vsel %vm75, %v77, %v73
    %v79 = vsel %vm39, %v24, 0.0
    %80 = vadd.xlane.f32.xlu0 %v79
    %v81 = vpop.xlane.xlu0 %80
    %v82 = vsel %vm41, %v25, 0.0
    %83 = vadd.xlane.f32.xlu0 %v82
    %v84 = vpop.xlane.xlu0 %83
    %v85 = vrcp.pop 8.0
    %v86 = vmul.f32 8.0, %v85
    %v87 = vsub.f32 1.0, %v86
    %v88 = vmul.f32 %v85, %v87
    %v89 = vadd.f32 %v85, %v88
    %vm90 = vweird.f32 %v85
    %v91 = vsel %vm90, %v85, %v89
    %v92 = vmul.f32 %v81, %v91
    %v93 = vmul.f32 %v84, %v91
    %v94 = vsub.f32 %v24, %v92
    %v95 = vsub.f32 %v25, %v93
    %v96 = vmul.f32 %v94, %v94
    %v97 = vmul.f32 %v95, %v95
    %v98 = vsel %vm39, %v96, 0.0
    %99 = vadd.xlane.f32.xlu0 %v98
    %v100 = vpop.xlane.xlu0 %99
    %v101 = vsel %vm41, %v97, 0.0
    %102 = vadd.xlane.f32.xlu0 %v101
    %v103 = vpop.xlane.xlu0 %102
    %v104 = vrcp.pop 7.0
    %v105 = vmul.f32 7.0, %v104
    %v106 = vsub.f32 1.0, %v105
    %v107 = vmul.f32 %v104, %v106
    %v108 = vadd.f32 %v104, %v107
    %vm109 = vweird.f32 %v104
    %v110 = vsel %vm109, %v104, %v108
    %v111 = vmul.f32 %v100, %v110
    %v112 = vmul.f32 %v103, %v110
    %v113 = vlaneseq
    %v114 = vshrl.u32 %v113, 7
    %v115 = vadd.s32 %v114, 8
    %v116 = vlaneseq
    %v117 = vand.u32 %v116, 127
    %vm118 = vcmp.eq.s32.totalorder %v114, %v117
    %vm119 = vcmp.eq.s32.totalorder %v115, %v117
    %v120 = vsel %vm118, 1, 0
    %v121 = vsel %vm119, 1, 0
    %v122 = vcvt.s32.f32 %v120
    %v123 = vcvt.s32.f32 %v121
    %v124 = vmul.f32 %v122, %v111
    %v125 = vmul.f32 %v123, %v112
    %vm126 = vcmask 80896
    %v127 = vsel %vm126, %v124, 0.0
    %vm128 = vcmask 74752
    %v129 = vsel %vm128, %v125, 0.0
    %v130 = vadd.f32 %v127, %v129
    %v131 = vrot.slane %v130, 4
    %v132 = vadd.f32 %v130, %v131
    %v133 = vrot.slane %v132, 2
    %v134 = vadd.f32 %v132, %v133
    %v135 = vrot.slane %v134, 1
    %v136 = vadd.f32 %v134, %v135
    %vm137 = vcmp.gt.f32.partialorder %v111, %v136
    %vm138 = vcmp.gt.f32.partialorder %v112, %v136
    %vm139 = vcmp.eq.f32.partialorder %v111, %v136
    %vm140 = vcmp.eq.f32.partialorder %v112, %v136
    %vm141 = vcmp.lt.s32.totalorder %v114, %v117
    %vm142 = vcmp.lt.s32.totalorder %v115, %v117
    %vm143 = vmand %vm139, %vm141
    %vm144 = vmand %vm140, %vm142
    %vm145 = vmor %vm137, %vm143
    %vm146 = vmor %vm138, %vm144
    %v147 = vsel %vm145, 1, 0
    %v148 = vsel %vm146, 1, 0
    %v149 = vcvt.s32.f32 %v147
    %v150 = vcvt.s32.f32 %v148
    %v151 = vsel %vm126, %v149, 0.0
    %v152 = vsel %vm128, %v150, 0.0
    %v153 = vadd.f32 %v151, %v152
    %v154 = vrot.slane %v153, 4
    %v155 = vadd.f32 %v153, %v154
    %v156 = vrot.slane %v155, 2
    %v157 = vadd.f32 %v155, %v156
    %v158 = vrot.slane %v157, 1
    %v159 = vadd.f32 %v157, %v158
    %v160 = vcvt.s32.f32 %v114
    %v161 = vcvt.s32.f32 %v115
    %v162 = vadd.f32 %v159, 5.0
    %vm163 = vcmp.ge.f32.partialorder %v162, 10.0
    %v164 = vsub.f32 %v162, 10.0
    %v165 = vsel %vm163, %v164, %v162
    %vm166 = vcmp.eq.f32.partialorder %v160, %v165
    %vm167 = vcmp.eq.f32.partialorder %v161, %v165
    %v168 = vsel %vm166, 1, 0
    %v169 = vsel %vm167, 1, 0
    %v170 = vcvt.s32.f32 %v168
    %v171 = vcvt.s32.f32 %v169
    %vm172 = vcmp.eq.f32.partialorder %v160, %v159
    %vm173 = vcmp.eq.f32.partialorder %v161, %v159
    %v174 = vsel %vm172, 1, 0
    %v175 = vsel %vm173, 1, 0
    %v176 = vcvt.s32.f32 %v174
    %v177 = vcvt.s32.f32 %v175
    %v178 = vmul.f32 %v24, %v78
    %v179 = vmul.f32 %v25, %v78
    %181 = vset.pattern.permute.xlu0 0
    %182 = vperm.xlu0 %181, %v170
    %v183 = vpop.permute.xlu0 %182
    %186 = vset.pattern.permute.xlu0 0
    %187 = vperm.xlu0 %186, %v171
    %v188 = vpop.permute.xlu0 %187
    %v190 = vperm.slane %v178, 0
    %v191 = vmul.f32 %v183, %v190
    %v192 = vmul.f32 %v188, %v190
    %193 = vset.pattern.permute.xlu0 1
    %194 = vperm.xlu0 %193, %v170
    %v195 = vpop.permute.xlu0 %194
    %197 = vset.pattern.permute.xlu0 1
    %198 = vperm.xlu0 %197, %v171
    %v199 = vpop.permute.xlu0 %198
    %v201 = vperm.slane %v178, 1
    %v202 = vmul.f32 %v195, %v201
    %v203 = vmul.f32 %v199, %v201
    %v204 = vadd.f32 %v191, %v202
    %v205 = vadd.f32 %v192, %v203
    %206 = vset.pattern.permute.xlu0 2
    %207 = vperm.xlu0 %206, %v170
    %v208 = vpop.permute.xlu0 %207
    %210 = vset.pattern.permute.xlu0 2
    %211 = vperm.xlu0 %210, %v171
    %v212 = vpop.permute.xlu0 %211
    %v214 = vperm.slane %v178, 2
    %v215 = vmul.f32 %v208, %v214
    %v216 = vmul.f32 %v212, %v214
    %v217 = vadd.f32 %v204, %v215
    %v218 = vadd.f32 %v205, %v216
    %219 = vset.pattern.permute.xlu0 3
    %220 = vperm.xlu0 %219, %v170
    %v221 = vpop.permute.xlu0 %220
    %223 = vset.pattern.permute.xlu0 3
    %224 = vperm.xlu0 %223, %v171
    %v225 = vpop.permute.xlu0 %224
    %v227 = vperm.slane %v178, 3
    %v228 = vmul.f32 %v221, %v227
    %v229 = vmul.f32 %v225, %v227
    %v230 = vadd.f32 %v217, %v228
    %v231 = vadd.f32 %v218, %v229
    %232 = vset.pattern.permute.xlu0 4
    %233 = vperm.xlu0 %232, %v170
    %v234 = vpop.permute.xlu0 %233
    %236 = vset.pattern.permute.xlu0 4
    %237 = vperm.xlu0 %236, %v171
    %v238 = vpop.permute.xlu0 %237
    %v240 = vperm.slane %v178, 4
    %v241 = vmul.f32 %v234, %v240
    %v242 = vmul.f32 %v238, %v240
    %v243 = vadd.f32 %v230, %v241
    %v244 = vadd.f32 %v231, %v242
    %245 = vset.pattern.permute.xlu0 5
    %246 = vperm.xlu0 %245, %v170
    %v247 = vpop.permute.xlu0 %246
    %249 = vset.pattern.permute.xlu0 5
    %250 = vperm.xlu0 %249, %v171
    %v251 = vpop.permute.xlu0 %250
    %v253 = vperm.slane %v178, 5
    %v254 = vmul.f32 %v247, %v253
    %v255 = vmul.f32 %v251, %v253
    %v256 = vadd.f32 %v243, %v254
    %v257 = vadd.f32 %v244, %v255
    %258 = vset.pattern.permute.xlu0 6
    %259 = vperm.xlu0 %258, %v170
    %v260 = vpop.permute.xlu0 %259
    %262 = vset.pattern.permute.xlu0 6
    %263 = vperm.xlu0 %262, %v171
    %v264 = vpop.permute.xlu0 %263
    %v266 = vperm.slane %v178, 6
    %v267 = vmul.f32 %v260, %v266
    %v268 = vmul.f32 %v264, %v266
    %v269 = vadd.f32 %v256, %v267
    %v270 = vadd.f32 %v257, %v268
    %271 = vset.pattern.permute.xlu0 7
    %272 = vperm.xlu0 %271, %v170
    %v273 = vpop.permute.xlu0 %272
    %275 = vset.pattern.permute.xlu0 7
    %276 = vperm.xlu0 %275, %v171
    %v277 = vpop.permute.xlu0 %276
    %v279 = vperm.slane %v178, 7
    %v280 = vmul.f32 %v273, %v279
    %v281 = vmul.f32 %v277, %v279
    %v282 = vadd.f32 %v269, %v280
    %v283 = vadd.f32 %v270, %v281
    %284 = vset.pattern.permute.xlu0 8
    %285 = vperm.xlu0 %284, %v170
    %v286 = vpop.permute.xlu0 %285
    %288 = vset.pattern.permute.xlu0 8
    %289 = vperm.xlu0 %288, %v171
    %v290 = vpop.permute.xlu0 %289
    %v292 = vperm.slane %v179, 0
    %v293 = vmul.f32 %v286, %v292
    %v294 = vmul.f32 %v290, %v292
    %v295 = vadd.f32 %v282, %v293
    %v296 = vadd.f32 %v283, %v294
    %297 = vset.pattern.permute.xlu0 9
    %298 = vperm.xlu0 %297, %v170
    %v299 = vpop.permute.xlu0 %298
    %301 = vset.pattern.permute.xlu0 9
    %302 = vperm.xlu0 %301, %v171
    %v303 = vpop.permute.xlu0 %302
    %v305 = vperm.slane %v179, 1
    %v306 = vmul.f32 %v299, %v305
    %v307 = vmul.f32 %v303, %v305
    %v308 = vadd.f32 %v295, %v306
    %v309 = vadd.f32 %v296, %v307
    %311 = vset.pattern.permute.xlu0 10
    %312 = vperm.xlu0 %311, %v27
    %v313 = vpop.permute.xlu0 %312
    %316 = vset.pattern.permute.xlu0 10
    %317 = vperm.xlu0 %316, %v28
    %v318 = vpop.permute.xlu0 %317
    %321 = vset.pattern.permute.xlu0 10
    %322 = vperm.xlu0 %321, %v29
    %v323 = vpop.permute.xlu0 %322
    %v326 = vperm.slane %v26, 0
    %v328 = vmul.f32 %v313, %v326
    %v329 = vmul.f32 %v318, %v326
    %v330 = vmul.f32 %v323, %v326
    %v331 = vsel %vm126, %v27, 0
    %v333 = vsel %vm126, %v28, 0
    %v335 = vsel %vm126, %v29, 0
    %vm337 = vcmask 1041408
    %v339 = vsel %vm337, %v309, 0
    %341 = vmatpush.msra.mxu0 0.0
    %342 = vmatpush.msra.mxu0 0.0
    %343 = vmatpush.msra.mxu0 0.0
    %344 = vmatpush.msra.mxu0 0.0
    %345 = vmatpush.msra.mxu0 0.0
    %346 = vmatpush.msra.mxu0 0.0
    %347 = vmatpush.msra.mxu0 0.0
    %348 = vmatpush.msra.mxu0 0.0
    %349 = vmatpush.msra.mxu0 0.0
    %350 = vmatpush.msra.mxu0 0.0
    %351 = vmatpush.msra.mxu0 0.0
    %352 = vmatpush.msra.mxu0 0.0
    %353 = vmatpush.msra.mxu0 0.0
    %354 = vmatpush.msra.mxu0 0.0
    %355 = vmatpush.msra.mxu0 %v339
    %356 = vmatpush.msra.mxu0 %v308
    %357 = vmatmul.f32.gmra.mxu0 %v331
    %v358 = vpop.f32.mrf.mxu0
    %v359 = vadd.f32 %v328, %v358
    %360 = vmatmul.f32.gmra.mxu0 %v333
    %v361 = vpop.f32.mrf.mxu0
    %v362 = vadd.f32 %v329, %v361
    %363 = vmatmul.f32.gmra.mxu0 %v335
    %v364 = vpop.f32.mrf.mxu0
    %v365 = vadd.f32 %v330, %v364
    %366 = vdwg.mxu0
    %368 = vset.pattern.permute.xlu0 0
    %369 = vperm.xlu0 %368, %v30
    %v370 = vpop.permute.xlu0 %369
    %373 = vset.pattern.permute.xlu0 0
    %374 = vperm.xlu0 %373, %v31
    %v375 = vpop.permute.xlu0 %374
    %378 = vset.pattern.permute.xlu0 0
    %379 = vperm.xlu0 %378, %v32
    %v380 = vpop.permute.xlu0 %379
    %v382 = vadd.f32 %v359, %v370
    %v383 = vadd.f32 %v362, %v375
    %v384 = vadd.f32 %v365, %v380
    %v385 = vtanh.pop %v382
    %v386 = vtanh.pop %v383
    %v387 = vtanh.pop %v384
    %v388 = vsel %vm39, %v385, 0.0
    %389 = vadd.xlane.f32.xlu0 %v388
    %v390 = vpop.xlane.xlu0 %389
    %v391 = vsel %vm39, %v386, 0.0
    %392 = vadd.xlane.f32.xlu0 %v391
    %v393 = vpop.xlane.xlu0 %392
    %vm394 = vcmask 60416
    %v395 = vsel %vm394, %v387, 0.0
    %396 = vadd.xlane.f32.xlu0 %v395
    %v397 = vpop.xlane.xlu0 %396
    %v398 = vadd.s32 %v114, 16
    %vm399 = vcmp.eq.s32.totalorder %v398, %v117
    %v400 = vsel %vm399, 1, 0
    %v401 = vcvt.s32.f32 %v400
    %v402 = vmul.f32 %v122, %v390
    %v403 = vmul.f32 %v123, %v393
    %v404 = vmul.f32 %v401, %v397
    %vm405 = vcmask 162816
    %v406 = vsel %vm405, %v402, 0.0
    %v407 = vsel %vm405, %v403, 0.0
    %v408 = vadd.f32 %v406, %v407
    %vm409 = vcmask 158720
    %v410 = vsel %vm409, %v404, 0.0
    %v411 = vadd.f32 %v408, %v410
    %v412 = vrot.slane %v411, 4
    %v413 = vadd.f32 %v411, %v412
    %v414 = vrot.slane %v413, 2
    %v415 = vadd.f32 %v413, %v414
    %v416 = vrot.slane %v415, 1
    %v417 = vadd.f32 %v415, %v416
    %v418 = vmul.f32 %v33, %v417
    %v419 = vmul.f32 %v34, %v417
    %v420 = vsel %vm405, %v418, 0.0
    %421 = vadd.xlane.f32.xlu0 %v420
    %v422 = vpop.xlane.xlu0 %421
    %vm423 = vcmask 156672
    %v424 = vsel %vm423, %v419, 0.0
    %425 = vadd.xlane.f32.xlu0 %v424
    %v426 = vpop.xlane.xlu0 %425
    %v427 = vadd.f32 %v422, %v35
    %v428 = vadd.f32 %v426, %v36
    %430 = vset.pattern.permute.xlu0 0
    %431 = vperm.xlu0 %430, %v427
    %v432 = vpop.permute.xlu0 %431
    %435 = vset.pattern.permute.xlu0 0
    %436 = vperm.xlu0 %435, %v428
    %v437 = vpop.permute.xlu0 %436
    %v439 = vmul.f32 %v176, %v432
    %v440 = vmul.f32 %v177, %v437
    %v441 = vsel %vm126, %v439, 0.0
    %v442 = vsel %vm128, %v440, 0.0
    %v443 = vadd.f32 %v441, %v442
    %v444 = vrot.slane %v443, 4
    %v445 = vadd.f32 %v443, %v444
    %v446 = vrot.slane %v445, 2
    %v447 = vadd.f32 %v445, %v446
    %v448 = vrot.slane %v447, 1
    %v449 = vadd.f32 %v447, %v448
    %v450 = vmul.f32 %v449, %v64
    %vm451 = vcmask 73728
    %452 = vst.msk [vmem:[#allocation2] sm:$0x1] %vm451, %v450
    // Predicated region
    $region26: #{predictor_forward.1} parent=1 // pred_check
      _
    $region27: #{predictor_forward.1} parent=1 // pred_check_branch
      %454 = sbr.rel (0) target = $region29
    $region28: #{predictor_forward.1} parent=1 // pred_region
      %456 = vsyncadd [#allocation3], 0
      %s458 = sshll.u32 [#allocation2], 4
      %s459 = int_to_ptr.vmem [resolvable:$true] %s458
      %s460 = sshll.u32 %s6, 4
      %s461 = int_to_ptr.hbm [resolvable:$true] %s460
      %463 = dma.vmem_to_hbm [thread:$0]  %s459, 16, %s461, [#allocation3]
    $region29: #{predictor_forward.1} parent=1 // pred_fallthru
      _
    // Predicated region
    $region30: #{predictor_forward.1} parent=1 // pred_check
      _
    $region31: #{predictor_forward.1} parent=1 // pred_check_branch
      %465 = sbr.rel (0) target = $region33
    $region32: #{predictor_forward.1} parent=1 // pred_region
      %467 = dma.done [#allocation3], 16
    $region33: #{predictor_forward.1} parent=1 // pred_fallthru
      _
    %468 = vsyncpa [#allocation3], 1

</llo_original>
